<compile_context>
chip_gen: v6e
topology: v6e:2x2x1
jax: 0.10.0
libtpu: 0.0.40
codegen_flags: <defaults>
</compile_context>

<pallas_src>
import functools

import jax
import jax.numpy as jnp
from jax import lax
from jax.experimental import pallas as pl
from jax.experimental.pallas import tpu as pltpu


# ----------------------------- Pallas kernel ------------------------------- #

def _criterion_kernel(logits_ref, classes_ref, boxes_ref, out_ref, *, alpha):
    """One grid step == one batch element (full-Q, full-C block).

    logits_ref : [1, Q, C]   predictions (any float dtype; cast to f32 here)
    classes_ref: [1, Q, 1]   int32 target class ids; id == C means "no object"
    boxes_ref  : [8, N]      rows 0..3 = matched src boxes (cx,cy,w,h),
                             rows 4..7 = matched tgt boxes (cx,cy,w,h)
    out_ref    : [1, 8, 128] f32 packed partials:
                   lane 0 = focal-loss sum for this batch element
                   lane 1 = non-empty prediction count for this batch element
                   lane 2 = L1 box-loss sum    (written on grid step 0 only)
                   lane 3 = GIoU box-loss sum  (written on grid step 0 only)
    """
    x = logits_ref[...].astype(jnp.float32)                      # [1, Q, C]
    cls = classes_ref[...]                                       # [1, Q, 1] int32
    C = x.shape[-1]

    # One-hot built on the fly: class id == C never matches iota < C -> zero row.
    iota_c = lax.broadcasted_iota(jnp.int32, x.shape, 2)
    t = (iota_c == cls).astype(jnp.float32)

    # Sigmoid focal loss, gamma = 2 (folded VALU form):
    #   ce      = max(x,0) - x*t - log(sigmoid(|x|))
    #   1 - p_t = p + t - 2*p*t
    #   alpha_t = (1-alpha) + (2*alpha-1)*t
    p = jax.nn.sigmoid(x)
    log_sp = jnp.log(jnp.where(x >= 0.0, p, 1.0 - p))            # = log(sigmoid(|x|))
    ce = jnp.maximum(x, 0.0) - x * t - log_sp                    # BCE-with-logits
    one_minus_pt = p + t - 2.0 * (p * t)
    w = (1.0 - alpha) + (2.0 * alpha - 1.0) * t
    focal_sum = jnp.sum(w * ce * (one_minus_pt * one_minus_pt))

    # Cardinality: prediction "non-empty"  <=>  first-argmax != C-1
    #                                      <=>  max(x[..., :C-1]) >= x[..., C-1]
    # Mask-based forms stay lane-dense on the existing vregs (no unaligned slices).
    max_rest = jnp.max(jnp.where(iota_c < C - 1, x, -jnp.inf), axis=-1, keepdims=True)
    last = jnp.sum(jnp.where(iota_c == C - 1, x, 0.0), axis=-1, keepdims=True)
    card = jnp.sum((max_rest >= last).astype(jnp.float32))

    # Lane-packed, unmasked (8,128) store of the two per-image partial scalars.
    lane = lax.broadcasted_iota(jnp.int32, (8, 128), 1)
    tile = jnp.where(lane == 0, focal_sum, jnp.where(lane == 1, card, 0.0))
    out_ref[...] = tile[None, :, :]

    # ---- fused matched-box L1 + GIoU losses (grid step 0 only) ----
    @pl.when(pl.program_id(0) == 0)
    def _():
        bx = boxes_ref[...].astype(jnp.float32)                  # [8, N]
        eps = 1e-8                                               # avoid NaN/Inf

        l1_sum = jnp.sum(jnp.abs(bx[0:4, :] - bx[4:8, :]))

        scx, scy = bx[0:1, :], bx[1:2, :]
        sw, sh = bx[2:3, :], bx[3:4, :]
        tcx, tcy = bx[4:5, :], bx[5:6, :]
        tw, th = bx[6:7, :], bx[7:8, :]

        sx0, sy0 = scx - 0.5 * sw, scy - 0.5 * sh
        sx1, sy1 = scx + 0.5 * sw, scy + 0.5 * sh
        tx0, ty0 = tcx - 0.5 * tw, tcy - 0.5 * th
        tx1, ty1 = tcx + 0.5 * tw, tcy + 0.5 * th

        area_s = (sx1 - sx0) * (sy1 - sy0)
        area_t = (tx1 - tx0) * (ty1 - ty0)
        inter = (jnp.maximum(jnp.minimum(sx1, tx1) - jnp.maximum(sx0, tx0), 0.0)
                 * jnp.maximum(jnp.minimum(sy1, ty1) - jnp.maximum(sy0, ty0), 0.0))
        union = jnp.maximum(area_s + area_t - inter, eps)
        iou = inter / union

        area_e = jnp.maximum(
            (jnp.maximum(sx1, tx1) - jnp.minimum(sx0, tx0))
            * (jnp.maximum(sy1, ty1) - jnp.minimum(sy0, ty0)), eps)
        giou = iou - (area_e - union) / area_e
        giou_sum = jnp.sum(1.0 - giou)

        box_tile = jnp.where(lane == 2, l1_sum, jnp.where(lane == 3, giou_sum, 0.0))
        out_ref[...] = out_ref[...] + box_tile[None, :, :]


# ------------------------------ JAX wrapper -------------------------------- #

def set_criterion_forward(pred_logits, pred_boxes, tgt_labels, tgt_boxes,
                          indices_src, indices_tgt, num_classes,
                          focal_alpha=0.25):
    """Reproduces SetCriterion.forward for losses = ['labels','cardinality','boxes'].

    pred_logits: [B, Q, C]    pred_boxes: [B, Q, 4]  (cx, cy, w, h)
    tgt_labels:  [B, M] int   tgt_boxes:  [B, M, 4]
    indices_src/indices_tgt: [B, M] (the matcher's (src, tgt) assignment per image)
    """
    B, Q, C = pred_logits.shape
    M = tgt_labels.shape[1]
    N = B * M

    batch_idx = jnp.repeat(jnp.arange(B), M)
    src_idx = indices_src.reshape(-1)
    tgt_idx = indices_tgt.reshape(-1)

    # ---- glue: dense [B, Q] target class-id map (no one-hot materialized) ----
    target_classes_o = tgt_labels[batch_idx, tgt_idx]                        # [B*M]
    target_classes = jnp.full((B, Q), num_classes, dtype=jnp.int32)
    target_classes = target_classes.at[batch_idx, src_idx].set(
        target_classes_o.astype(jnp.int32))                                 # [B, Q]
    classes_in = target_classes[..., None]                                   # [B, Q, 1]

    num_boxes = float(max(N, 1))                                             # clamp(min=1)
    tgt_lengths = jnp.full((B,), float(M), dtype=jnp.float32)

    # ---- glue: gather + stack matched boxes into one [8, N] input ----
    src_boxes_t = pred_boxes[batch_idx, src_idx].T                           # [4, N]
    target_boxes_t = tgt_boxes[batch_idx, tgt_idx].T                         # [4, N]
    boxes_stacked = jnp.concatenate([src_boxes_t, target_boxes_t], axis=0)   # [8, N]

    # ---- single fused pallas_call: focal + cardinality + box losses ----
    out = pl.pallas_call(
        functools.partial(_criterion_kernel, alpha=focal_alpha),
        grid=(B,),
        in_specs=[
            pl.BlockSpec((1, Q, C), lambda b: (b, 0, 0)),   # full-Q, full-C block
            pl.BlockSpec((1, Q, 1), lambda b: (b, 0, 0)),
            pl.BlockSpec((8, N), lambda b: (0, 0)),         # resident across steps
        ],
        out_specs=pl.BlockSpec((1, 8, 128), lambda b: (b, 0, 0)),
        out_shape=jax.ShapeDtypeStruct((B, 8, 128), jnp.float32),
        compiler_params=pltpu.CompilerParams(
            dimension_semantics=("parallel",),              # shard over TCs on v7x
            vmem_limit_bytes=32 * 1024 * 1024,
        ),
    )(pred_logits, classes_in, boxes_stacked)

    focal_sum = jnp.sum(out[:, 0, 0])
    card_pred = out[:, 0, 1]                                                 # [B]
    card_err = jnp.mean(jnp.abs(card_pred - tgt_lengths))

    # loss_ce = sigmoid_focal_loss(...).mean(1).sum()/num_boxes * Q  ==  sum/num_boxes
    loss_ce = focal_sum / num_boxes

    # class_error (logging only) via top-1 accuracy on matched predictions — glue.
    matched_logits = pred_logits[batch_idx, src_idx]
    acc = jnp.mean((jnp.argmax(matched_logits, axis=-1) == target_classes_o)
                   .astype(jnp.float32)) * 100.0

    return {
        'loss_ce': loss_ce,
        'class_error': 100.0 - acc,
        'cardinality_error': card_err,
        'loss_bbox': out[0, 0, 2] / num_boxes,
        'loss_giou': out[0, 0, 3] / num_boxes,
    }


# --------------------------------- main ------------------------------------ #

if __name__ == "__main__":
    B, Q, C, M = 2, 8, 4, 3           # batch, num queries, num classes, targets/image

    key = jax.random.PRNGKey(0)
    k1, k2, k3, k4 = jax.random.split(key, 4)

    pred_logits = jax.random.normal(k1, (B, Q, C), dtype=jnp.float32)
    pred_boxes = jax.nn.sigmoid(jax.random.normal(k2, (B, Q, 4), dtype=jnp.float32))
    tgt_labels = jax.random.randint(k3, (B, M), 0, C, dtype=jnp.int32)
    tgt_boxes = jax.random.uniform(k4, (B, M, 4), dtype=jnp.float32,
                                   minval=0.1, maxval=0.9)

    # Fixed "matcher" output (Hungarian matching itself is not Pallas-translatable).
    indices_src = jnp.array([[0, 2, 5], [1, 3, 7]], dtype=jnp.int32)
    indices_tgt = jnp.array([[0, 1, 2], [2, 0, 1]], dtype=jnp.int32)

    losses = set_criterion_forward(pred_logits, pred_boxes, tgt_labels, tgt_boxes,
                                   indices_src, indices_tgt, num_classes=C,
                                   focal_alpha=0.25)
    jax.block_until_ready(losses)
    print("KERNEL_OK")
</pallas_src>

<mosaic_0001>
module attributes {stable_mosaic.version = 11 : i64} {
  func.func @_criterion_kernel(%arg0: i32, %arg1: memref<1x8x4xf32, #tpu.memory_space<vmem>>, %arg2: memref<1x8x1xi32, #tpu.memory_space<vmem>>, %arg3: memref<8x6xf32, #tpu.memory_space<vmem>>, %arg4: memref<1x8x128xf32, #tpu.memory_space<vmem>>) attributes {dimension_semantics = [#tpu.dimension_semantics<parallel>], iteration_bounds = array<i64: 2>, scalar_prefetch = 0 : i64, scratch_operands = 0 : i64, tpu.core_type = #tpu.core_type<tc>, window_params = [{transform_indices = @transform_0, window_bounds = array<i64: 1, 8, 4>}, {transform_indices = @transform_1, window_bounds = array<i64: 1, 8, 1>}, {pipeline_mode = #tpu.pipeline_mode<synchronous>, transform_indices = @transform_2, window_bounds = array<i64: 8, 6>}, {transform_indices = @transform_3, window_bounds = array<i64: 1, 8, 128>}]} {
    %c0 = arith.constant 0 : index
    %c0_0 = arith.constant 0 : index
    %c0_1 = arith.constant 0 : index
    %0 = vector.load %arg1[%c0, %c0_0, %c0_1] : memref<1x8x4xf32, #tpu.memory_space<vmem>>, vector<1x8x4xf32>
    %c0_2 = arith.constant 0 : index
    %c0_3 = arith.constant 0 : index
    %c0_4 = arith.constant 0 : index
    %1 = vector.load %arg2[%c0_2, %c0_3, %c0_4] : memref<1x8x1xi32, #tpu.memory_space<vmem>>, vector<1x8x1xi32>
    %2 = tpu.iota {dimensions = array<i32: 2>} : vector<1x8x4xi32>
    %3 = vector.broadcast %1 : vector<1x8x1xi32> to vector<1x8x4xi32>
    %4 = arith.cmpi eq, %2, %3 : vector<1x8x4xi32>
    %5 = arith.extui %4 : vector<1x8x4xi1> to vector<1x8x4xi32>
    %6 = arith.sitofp %5 : vector<1x8x4xi32> to vector<1x8x4xf32>
    %7 = arith.negf %0 : vector<1x8x4xf32>
    %8 = math.exp %7 : vector<1x8x4xf32>
    %cst = arith.constant 1.000000e+00 : f32
    %9 = vector.broadcast %cst : f32 to vector<1x8x4xf32>
    %10 = arith.addf %9, %8 : vector<1x8x4xf32>
    %11 = arith.divf %9, %10 : vector<1x8x4xf32>
    %cst_5 = arith.constant 0.000000e+00 : f32
    %12 = vector.broadcast %cst_5 : f32 to vector<1x8x4xf32>
    %13 = arith.cmpf oge, %0, %12 : vector<1x8x4xf32>
    %cst_6 = arith.constant 1.000000e+00 : f32
    %14 = vector.broadcast %cst_6 : f32 to vector<1x8x4xf32>
    %15 = arith.subf %14, %11 : vector<1x8x4xf32>
    %16 = arith.select %13, %11, %15 : vector<1x8x4xi1>, vector<1x8x4xf32>
    %17 = math.log %16 : vector<1x8x4xf32>
    %cst_7 = arith.constant 0.000000e+00 : f32
    %18 = vector.broadcast %cst_7 : f32 to vector<1x8x4xf32>
    %19 = arith.maximumf %0, %18 : vector<1x8x4xf32>
    %20 = arith.mulf %0, %6 : vector<1x8x4xf32>
    %21 = arith.subf %19, %20 : vector<1x8x4xf32>
    %22 = arith.subf %21, %17 : vector<1x8x4xf32>
    %23 = arith.addf %11, %6 : vector<1x8x4xf32>
    %24 = arith.mulf %11, %6 : vector<1x8x4xf32>
    %cst_8 = arith.constant 2.000000e+00 : f32
    %25 = vector.broadcast %cst_8 : f32 to vector<1x8x4xf32>
    %26 = arith.mulf %25, %24 : vector<1x8x4xf32>
    %27 = arith.subf %23, %26 : vector<1x8x4xf32>
    %cst_9 = arith.constant -5.000000e-01 : f32
    %28 = vector.broadcast %cst_9 : f32 to vector<1x8x4xf32>
    %29 = arith.mulf %28, %6 : vector<1x8x4xf32>
    %cst_10 = arith.constant 7.500000e-01 : f32
    %30 = vector.broadcast %cst_10 : f32 to vector<1x8x4xf32>
    %31 = arith.addf %30, %29 : vector<1x8x4xf32>
    %32 = arith.mulf %31, %22 : vector<1x8x4xf32>
    %33 = arith.mulf %27, %27 : vector<1x8x4xf32>
    %34 = arith.mulf %32, %33 : vector<1x8x4xf32>
    %35 = vector.shape_cast %34 : vector<1x8x4xf32> to vector<1x1x8x4xf32>
    %cst_11 = arith.constant dense<0.000000e+00> : vector<1xf32>
    %36 = vector.multi_reduction <add>, %35, %cst_11 [1, 2, 3] : vector<1x1x8x4xf32> to vector<1xf32>
    %37 = vector.shape_cast %36 : vector<1xf32> to vector<1x1x1x1xf32>
    %38 = vector.extract %37[0, 0, 0, 0] : f32 from vector<1x1x1x1xf32>
    %c3_i32 = arith.constant 3 : i32
    %39 = vector.broadcast %c3_i32 : i32 to vector<1x8x4xi32>
    %40 = arith.cmpi slt, %2, %39 : vector<1x8x4xi32>
    %cst_12 = arith.constant 0xFF800000 : f32
    %41 = vector.broadcast %cst_12 : f32 to vector<1x8x4xf32>
    %42 = arith.select %40, %0, %41 : vector<1x8x4xi1>, vector<1x8x4xf32>
    %cst_13 = arith.constant dense<0xFF800000> : vector<1x8xf32>
    %43 = vector.multi_reduction <maximumf>, %42, %cst_13 [2] : vector<1x8x4xf32> to vector<1x8xf32>
    %44 = vector.shape_cast %43 : vector<1x8xf32> to vector<1x8x1xf32>
    %c3_i32_14 = arith.constant 3 : i32
    %45 = vector.broadcast %c3_i32_14 : i32 to vector<1x8x4xi32>
    %46 = arith.cmpi eq, %2, %45 : vector<1x8x4xi32>
    %cst_15 = arith.constant 0.000000e+00 : f32
    %47 = vector.broadcast %cst_15 : f32 to vector<1x8x4xf32>
    %48 = arith.select %46, %0, %47 : vector<1x8x4xi1>, vector<1x8x4xf32>
    %cst_16 = arith.constant dense<0.000000e+00> : vector<1x8xf32>
    %49 = vector.multi_reduction <add>, %48, %cst_16 [2] : vector<1x8x4xf32> to vector<1x8xf32>
    %50 = vector.shape_cast %49 : vector<1x8xf32> to vector<1x8x1xf32>
    %51 = arith.cmpf oge, %44, %50 : vector<1x8x1xf32>
    %52 = arith.extui %51 : vector<1x8x1xi1> to vector<1x8x1xi32>
    %53 = arith.sitofp %52 : vector<1x8x1xi32> to vector<1x8x1xf32>
    %54 = vector.shape_cast %53 : vector<1x8x1xf32> to vector<1x1x8x1xf32>
    %cst_17 = arith.constant dense<0.000000e+00> : vector<1xf32>
    %55 = vector.multi_reduction <add>, %54, %cst_17 [1, 2, 3] : vector<1x1x8x1xf32> to vector<1xf32>
    %56 = vector.shape_cast %55 : vector<1xf32> to vector<1x1x1x1xf32>
    %57 = vector.extract %56[0, 0, 0, 0] : f32 from vector<1x1x1x1xf32>
    %58 = tpu.iota {dimensions = array<i32: 1>} : vector<8x128xi32>
    %c0_i32 = arith.constant 0 : i32
    %59 = vector.broadcast %c0_i32 : i32 to vector<8x128xi32>
    %60 = arith.cmpi eq, %58, %59 : vector<8x128xi32>
    %c1_i32 = arith.constant 1 : i32
    %61 = vector.broadcast %c1_i32 : i32 to vector<8x128xi32>
    %62 = arith.cmpi eq, %58, %61 : vector<8x128xi32>
    %cst_18 = arith.constant 0.000000e+00 : f32
    %63 = vector.broadcast %57 : f32 to vector<8x128xf32>
    %64 = vector.broadcast %cst_18 : f32 to vector<8x128xf32>
    %65 = arith.select %62, %63, %64 : vector<8x128xi1>, vector<8x128xf32>
    %66 = vector.broadcast %38 : f32 to vector<8x128xf32>
    %67 = arith.select %60, %66, %65 : vector<8x128xi1>, vector<8x128xf32>
    %68 = vector.shape_cast %67 : vector<8x128xf32> to vector<1x8x128xf32>
    %c0_19 = arith.constant 0 : index
    %c0_20 = arith.constant 0 : index
    %c0_21 = arith.constant 0 : index
    %69 = vector.load %arg4[%c0_19, %c0_20, %c0_21] : memref<1x8x128xf32, #tpu.memory_space<vmem>>, vector<1x8x128xf32>
    tpu.vector_store %arg4[%c0_19, %c0_20, %c0_21], %68 {strides = array<i32>} : memref<1x8x128xf32, #tpu.memory_space<vmem>>, vector<1x8x128xf32>,
    %c0_i32_22 = arith.constant 0 : i32
    %70 = arith.cmpi eq, %arg0, %c0_i32_22 : i32
    %71 = arith.extui %70 : i1 to i32
    %c0_i32_23 = arith.constant 0 : i32
    %72 = arith.cmpi ne, %71, %c0_i32_23 : i32
    scf.if %72 {
      %c0_24 = arith.constant 0 : index
      %c0_25 = arith.constant 0 : index
      %73 = vector.load %arg3[%c0_24, %c0_25] : memref<8x6xf32, #tpu.memory_space<vmem>>, vector<8x6xf32>
      %74 = vector.extract_strided_slice %73 {offsets = [0, 0], sizes = [4, 6], strides = [1, 1]} : vector<8x6xf32> to vector<4x6xf32>
      %75 = vector.extract_strided_slice %73 {offsets = [4, 0], sizes = [4, 6], strides = [1, 1]} : vector<8x6xf32> to vector<4x6xf32>
      %76 = arith.subf %74, %75 : vector<4x6xf32>
      %77 = math.absf %76 : vector<4x6xf32>
      %78 = vector.shape_cast %77 : vector<4x6xf32> to vector<1x4x6xf32>
      %cst_26 = arith.constant dense<0.000000e+00> : vector<1xf32>
      %79 = vector.multi_reduction <add>, %78, %cst_26 [1, 2] : vector<1x4x6xf32> to vector<1xf32>
      %80 = vector.shape_cast %79 : vector<1xf32> to vector<1x1x1xf32>
      %81 = vector.extract %80[0, 0, 0] : f32 from vector<1x1x1xf32>
      %82 = vector.extract_strided_slice %73 {offsets = [0, 0], sizes = [1, 6], strides = [1, 1]} : vector<8x6xf32> to vector<1x6xf32>
      %83 = vector.extract_strided_slice %73 {offsets = [1, 0], sizes = [1, 6], strides = [1, 1]} : vector<8x6xf32> to vector<1x6xf32>
      %84 = vector.extract_strided_slice %73 {offsets = [2, 0], sizes = [1, 6], strides = [1, 1]} : vector<8x6xf32> to vector<1x6xf32>
      %85 = vector.extract_strided_slice %73 {offsets = [3, 0], sizes = [1, 6], strides = [1, 1]} : vector<8x6xf32> to vector<1x6xf32>
      %86 = vector.extract_strided_slice %73 {offsets = [4, 0], sizes = [1, 6], strides = [1, 1]} : vector<8x6xf32> to vector<1x6xf32>
      %87 = vector.extract_strided_slice %73 {offsets = [5, 0], sizes = [1, 6], strides = [1, 1]} : vector<8x6xf32> to vector<1x6xf32>
      %88 = vector.extract_strided_slice %73 {offsets = [6, 0], sizes = [1, 6], strides = [1, 1]} : vector<8x6xf32> to vector<1x6xf32>
      %89 = vector.extract_strided_slice %73 {offsets = [7, 0], sizes = [1, 6], strides = [1, 1]} : vector<8x6xf32> to vector<1x6xf32>
      %cst_27 = arith.constant 5.000000e-01 : f32
      %90 = vector.broadcast %cst_27 : f32 to vector<1x6xf32>
      %91 = arith.mulf %90, %84 : vector<1x6xf32>
      %92 = arith.subf %82, %91 : vector<1x6xf32>
      %cst_28 = arith.constant 5.000000e-01 : f32
      %93 = vector.broadcast %cst_28 : f32 to vector<1x6xf32>
      %94 = arith.mulf %93, %85 : vector<1x6xf32>
      %95 = arith.subf %83, %94 : vector<1x6xf32>
      %cst_29 = arith.constant 5.000000e-01 : f32
      %96 = vector.broadcast %cst_29 : f32 to vector<1x6xf32>
      %97 = arith.mulf %96, %84 : vector<1x6xf32>
      %98 = arith.addf %82, %97 : vector<1x6xf32>
      %cst_30 = arith.constant 5.000000e-01 : f32
      %99 = vector.broadcast %cst_30 : f32 to vector<1x6xf32>
      %100 = arith.mulf %99, %85 : vector<1x6xf32>
      %101 = arith.addf %83, %100 : vector<1x6xf32>
      %cst_31 = arith.constant 5.000000e-01 : f32
      %102 = vector.broadcast %cst_31 : f32 to vector<1x6xf32>
      %103 = arith.mulf %102, %88 : vector<1x6xf32>
      %104 = arith.subf %86, %103 : vector<1x6xf32>
      %cst_32 = arith.constant 5.000000e-01 : f32
      %105 = vector.broadcast %cst_32 : f32 to vector<1x6xf32>
      %106 = arith.mulf %105, %89 : vector<1x6xf32>
      %107 = arith.subf %87, %106 : vector<1x6xf32>
      %cst_33 = arith.constant 5.000000e-01 : f32
      %108 = vector.broadcast %cst_33 : f32 to vector<1x6xf32>
      %109 = arith.mulf %108, %88 : vector<1x6xf32>
      %110 = arith.addf %86, %109 : vector<1x6xf32>
      %cst_34 = arith.constant 5.000000e-01 : f32
      %111 = vector.broadcast %cst_34 : f32 to vector<1x6xf32>
      %112 = arith.mulf %111, %89 : vector<1x6xf32>
      %113 = arith.addf %87, %112 : vector<1x6xf32>
      %114 = arith.subf %98, %92 : vector<1x6xf32>
      %115 = arith.subf %101, %95 : vector<1x6xf32>
      %116 = arith.mulf %114, %115 : vector<1x6xf32>
      %117 = arith.subf %110, %104 : vector<1x6xf32>
      %118 = arith.subf %113, %107 : vector<1x6xf32>
      %119 = arith.mulf %117, %118 : vector<1x6xf32>
      %120 = arith.minimumf %98, %110 : vector<1x6xf32>
      %121 = arith.maximumf %92, %104 : vector<1x6xf32>
      %122 = arith.subf %120, %121 : vector<1x6xf32>
      %cst_35 = arith.constant 0.000000e+00 : f32
      %123 = vector.broadcast %cst_35 : f32 to vector<1x6xf32>
      %124 = arith.maximumf %122, %123 : vector<1x6xf32>
      %125 = arith.minimumf %101, %113 : vector<1x6xf32>
      %126 = arith.maximumf %95, %107 : vector<1x6xf32>
      %127 = arith.subf %125, %126 : vector<1x6xf32>
      %cst_36 = arith.constant 0.000000e+00 : f32
      %128 = vector.broadcast %cst_36 : f32 to vector<1x6xf32>
      %129 = arith.maximumf %127, %128 : vector<1x6xf32>
      %130 = arith.mulf %124, %129 : vector<1x6xf32>
      %131 = arith.addf %116, %119 : vector<1x6xf32>
      %132 = arith.subf %131, %130 : vector<1x6xf32>
      %cst_37 = arith.constant 9.99999993E-9 : f32
      %133 = vector.broadcast %cst_37 : f32 to vector<1x6xf32>
      %134 = arith.maximumf %132, %133 : vector<1x6xf32>
      %135 = arith.divf %130, %134 : vector<1x6xf32>
      %136 = arith.maximumf %98, %110 : vector<1x6xf32>
      %137 = arith.minimumf %92, %104 : vector<1x6xf32>
      %138 = arith.subf %136, %137 : vector<1x6xf32>
      %139 = arith.maximumf %101, %113 : vector<1x6xf32>
      %140 = arith.minimumf %95, %107 : vector<1x6xf32>
      %141 = arith.subf %139, %140 : vector<1x6xf32>
      %142 = arith.mulf %138, %141 : vector<1x6xf32>
      %cst_38 = arith.constant 9.99999993E-9 : f32
      %143 = vector.broadcast %cst_38 : f32 to vector<1x6xf32>
      %144 = arith.maximumf %142, %143 : vector<1x6xf32>
      %145 = arith.subf %144, %134 : vector<1x6xf32>
      %146 = arith.divf %145, %144 : vector<1x6xf32>
      %147 = arith.subf %135, %146 : vector<1x6xf32>
      %cst_39 = arith.constant 1.000000e+00 : f32
      %148 = vector.broadcast %cst_39 : f32 to vector<1x6xf32>
      %149 = arith.subf %148, %147 : vector<1x6xf32>
      %150 = vector.shape_cast %149 : vector<1x6xf32> to vector<1x1x6xf32>
      %cst_40 = arith.constant dense<0.000000e+00> : vector<1xf32>
      %151 = vector.multi_reduction <add>, %150, %cst_40 [1, 2] : vector<1x1x6xf32> to vector<1xf32>
      %152 = vector.shape_cast %151 : vector<1xf32> to vector<1x1x1xf32>
      %153 = vector.extract %152[0, 0, 0] : f32 from vector<1x1x1xf32>
      %c2_i32 = arith.constant 2 : i32
      %154 = vector.broadcast %c2_i32 : i32 to vector<8x128xi32>
      %155 = arith.cmpi eq, %58, %154 : vector<8x128xi32>
      %c3_i32_41 = arith.constant 3 : i32
      %156 = vector.broadcast %c3_i32_41 : i32 to vector<8x128xi32>
      %157 = arith.cmpi eq, %58, %156 : vector<8x128xi32>
      %cst_42 = arith.constant 0.000000e+00 : f32
      %158 = vector.broadcast %153 : f32 to vector<8x128xf32>
      %159 = vector.broadcast %cst_42 : f32 to vector<8x128xf32>
      %160 = arith.select %157, %158, %159 : vector<8x128xi1>, vector<8x128xf32>
      %161 = vector.broadcast %81 : f32 to vector<8x128xf32>
      %162 = arith.select %155, %161, %160 : vector<8x128xi1>, vector<8x128xf32>
      %c0_43 = arith.constant 0 : index
      %c0_44 = arith.constant 0 : index
      %c0_45 = arith.constant 0 : index
      %163 = vector.load %arg4[%c0_43, %c0_44, %c0_45] : memref<1x8x128xf32, #tpu.memory_space<vmem>>, vector<1x8x128xf32>
      %164 = vector.shape_cast %162 : vector<8x128xf32> to vector<1x8x128xf32>
      %165 = arith.addf %163, %164 : vector<1x8x128xf32>
      %c0_46 = arith.constant 0 : index
      %c0_47 = arith.constant 0 : index
      %c0_48 = arith.constant 0 : index
      %166 = vector.load %arg4[%c0_46, %c0_47, %c0_48] : memref<1x8x128xf32, #tpu.memory_space<vmem>>, vector<1x8x128xf32>
      tpu.vector_store %arg4[%c0_46, %c0_47, %c0_48], %165 {strides = array<i32>} : memref<1x8x128xf32, #tpu.memory_space<vmem>>, vector<1x8x128xf32>,
    } else {
    }
    return
  }
  func.func @transform_0(%arg0: i32) -> (i32, i32, i32) {
    %c0_i32 = arith.constant 0 : i32
    %c0_i32_0 = arith.constant 0 : i32
    %c0_i32_1 = arith.constant 0 : i32
    return %arg0, %c0_i32, %c0_i32_0 : i32, i32, i32
  }
  func.func @transform_1(%arg0: i32) -> (i32, i32, i32) {
    %c0_i32 = arith.constant 0 : i32
    %c0_i32_0 = arith.constant 0 : i32
    %c0_i32_1 = arith.constant 0 : i32
    return %arg0, %c0_i32, %c0_i32_0 : i32, i32, i32
  }
  func.func @transform_2(%arg0: i32) -> (i32, i32) {
    %c0_i32 = arith.constant 0 : i32
    %c0_i32_0 = arith.constant 0 : i32
    %c0_i32_1 = arith.constant 0 : i32
    return %c0_i32, %c0_i32_0 : i32, i32
  }
  func.func @transform_3(%arg0: i32) -> (i32, i32, i32) {
    %c0_i32 = arith.constant 0 : i32
    %c0_i32_0 = arith.constant 0 : i32
    %c0_i32_1 = arith.constant 0 : i32
    return %arg0, %c0_i32, %c0_i32_0 : i32, i32, i32
  }
}

</mosaic_0001>

<llo_original>
// kernel: tpu_custom_call.1
$region0: #{tpu_custom_call.1}
  #allocation0 [shape = 'u32[]', space=smem, size = 0x4, offset = 0x4, fixed_abs, tag = 'smem constant byte address 0x4 - core index']
  #allocation1 [shape = 'u32[144,128]{1,0:T(1,128)}', space=vmem, size = 0x12000, scoped, tag = 'internal scratch']
  %s0 = inlined_call_operand.vmem [shape: f32[2,8,4], index: 0, kind: input, shape index: {}]
  %s1 = inlined_call_operand.vmem [shape: s32[2,8,1], index: 1, kind: input, shape index: {}]
  %s2 = inlined_call_operand.vmem [shape: f32[8,6], index: 2, kind: input, shape index: {}]
  %s3 = inlined_call_operand.hbm [shape: f32[2,8,128], index: 3, kind: output, shape index: {}]
  %s4 = sld [smem:[#allocation0]]
  $region49: #{tpu_custom_call.1} parent=0
    _
  %s6 = ssub.s32 1, %s4
  %s7 = scalar_select 0, %s6, %s4
  $region1: #{tpu_custom_call.1} parent=0
    #allocation2 [shape = 'u8[8192]{0}', space=vmem, size = 0x2000, scoped, tag = 'output window, operand 0']
    #allocation3 [shape = 's32[2]{0}', space=sflag, size = 0x8, scoped, tag = 'scoped memory for tpu_custom_call.1']
    %8 = vsyncpa [#allocation3], 0
    %s9 = scalar_lea.sflag [#allocation3], 1
    %10 = vsyncpa %s9, 0
    loop: start=0, step=1, limit=4
    $region2: #{tpu_custom_call.1} parent=1 // loop_pre_header
      _
    $region3: #{tpu_custom_call.1} parent=1 // loop_header
      %s12 = sphi 0, %s16
      %p13 = scmp.ge.s32.totalorder %s12, 4
      %s22 = sphi 0, %s24
      %s25 = sphi 0, %s22
      %s26 = sphi 0, %s25
      %s42 = sphi 0, %s26
      %s48 = sphi 0, %s50
      %s51 = sphi 0, %s48
      %s52 = sphi 0, %s51
      %s68 = sphi 0, %s52
      %s72 = sphi 0, %s72
      %s74 = sphi 0, %s72
      %s75 = sphi 0, %s74
      %s89 = sphi 0, %s75
      %s95 = sphi 0, %s97
      %s98 = sphi 0, %s95
      %s99 = sphi 0, %s98
      %s115 = sphi 0, %s99
    $region4: #{tpu_custom_call.1} parent=1 // loop_header_branch
      %15 = sbr.rel (%p13) target = $region8
    $region5: #{tpu_custom_call.1} parent=1 // loop_body
      %s17 = ssub.s32 %s12, 1
      %s18 = ssub.s32 %s12, 2
      %s19 = sadd.s32 %s12, 1
      %s20 = ssub.s32 %s12, %s19
      %p21 = scmp.eq.s32.totalorder %s20, 0
      %s23 = sadd.s32 %s22, 1
      %s24 = scalar_select %p21, %s22, %s23
      %p27 = pneg %p21
      %p28 = scmp.eq.s32.totalorder %s12, 1
      %p29 = por %p27, %p28
      %p30 = scmp.ne.s32.totalorder %s22, %s25
      %p31 = scmp.eq.s32.totalorder %s12, 0
      %p32 = por %p30, %p31
      %p33 = scmp.ne.s32.totalorder %s22, %s25
      %p34 = scmp.eq.s32.totalorder %s17, 1
      %p35 = por %p33, %p34
      %p36 = scmp.ne.s32.totalorder %s25, %s26
      %p37 = scmp.eq.s32.totalorder %s17, 0
      %p38 = por %p36, %p37
      %p39 = scmp.ne.s32.totalorder %s25, %s26
      %p40 = scmp.eq.s32.totalorder %s18, 1
      %p41 = por %p39, %p40
      %p43 = scmp.ne.s32.totalorder %s26, %s42
      %p44 = scmp.eq.s32.totalorder %s18, 0
      %p45 = por %p43, %p44
      %s46 = ssub.s32 %s12, %s19
      %p47 = scmp.eq.s32.totalorder %s46, 0
      %s49 = sadd.s32 %s48, 1
      %s50 = scalar_select %p47, %s48, %s49
      %p53 = pneg %p47
      %p54 = scmp.eq.s32.totalorder %s12, 1
      %p55 = por %p53, %p54
      %p56 = scmp.ne.s32.totalorder %s48, %s51
      %p57 = scmp.eq.s32.totalorder %s12, 0
      %p58 = por %p56, %p57
      %p59 = scmp.ne.s32.totalorder %s48, %s51
      %p60 = scmp.eq.s32.totalorder %s17, 1
      %p61 = por %p59, %p60
      %p62 = scmp.ne.s32.totalorder %s51, %s52
      %p63 = scmp.eq.s32.totalorder %s17, 0
      %p64 = por %p62, %p63
      %p65 = scmp.ne.s32.totalorder %s51, %s52
      %p66 = scmp.eq.s32.totalorder %s18, 1
      %p67 = por %p65, %p66
      %p69 = scmp.ne.s32.totalorder %s52, %s68
      %p70 = scmp.eq.s32.totalorder %s18, 0
      %p71 = por %p69, %p70
      %s73 = sadd.s32 %s72, 1
      %p76 = scmp.eq.s32.totalorder %s12, 1
      %p77 = scmp.ne.s32.totalorder %s72, %s74
      %p78 = scmp.eq.s32.totalorder %s12, 0
      %p79 = por %p77, %p78
      %p80 = scmp.ne.s32.totalorder %s72, %s74
      %p81 = scmp.eq.s32.totalorder %s17, 1
      %p82 = por %p80, %p81
      %p83 = scmp.ne.s32.totalorder %s74, %s75
      %p84 = scmp.eq.s32.totalorder %s17, 0
      %p85 = por %p83, %p84
      %p86 = scmp.ne.s32.totalorder %s74, %s75
      %p87 = scmp.eq.s32.totalorder %s18, 1
      %p88 = por %p86, %p87
      %p90 = scmp.ne.s32.totalorder %s75, %s89
      %p91 = scmp.eq.s32.totalorder %s18, 0
      %p92 = por %p90, %p91
      %s93 = ssub.s32 %s12, %s19
      %p94 = scmp.eq.s32.totalorder %s93, 0
      %s96 = sadd.s32 %s95, 1
      %s97 = scalar_select %p94, %s95, %s96
      %p100 = pneg %p94
      %p101 = scmp.eq.s32.totalorder %s12, 1
      %p102 = por %p100, %p101
      %p103 = scmp.ne.s32.totalorder %s95, %s98
      %p104 = scmp.eq.s32.totalorder %s12, 0
      %p105 = por %p103, %p104
      %p106 = scmp.ne.s32.totalorder %s95, %s98
      %p107 = scmp.eq.s32.totalorder %s17, 1
      %p108 = por %p106, %p107
      %p109 = scmp.ne.s32.totalorder %s98, %s99
      %p110 = scmp.eq.s32.totalorder %s17, 0
      %p111 = por %p109, %p110
      %p112 = scmp.ne.s32.totalorder %s98, %s99
      %p113 = scmp.eq.s32.totalorder %s18, 1
      %p114 = por %p112, %p113
      %p116 = scmp.ne.s32.totalorder %s99, %s115
      %p117 = scmp.eq.s32.totalorder %s18, 0
      %p118 = por %p116, %p117
      %p119 = scmp.le.s32.totalorder 1, %s12
      %p120 = scmp.lt.s32.totalorder %s12, 3
      %p121 = pnand %p119, %p120
      %p122 = pneg %p121
      // Predicated region
      $region9: #{tpu_custom_call.1} parent=5 // pred_check
        _
      $region10: #{tpu_custom_call.1} parent=5 // pred_check_branch
        %124 = sbr.rel (%p121) target = $region12
      $region11: #{tpu_custom_call.1} parent=5 // pred_region
        %s125 = ssub.s32 %s12, 1
        // Predicated region
        $region13: #{tpu_custom_call.1} parent=11 // pred_check
          %p126 = pneg %p85
        $region14: #{tpu_custom_call.1} parent=11 // pred_check_branch
          %128 = sbr.rel (%p126) target = $region16
        $region15: #{tpu_custom_call.1} parent=11 // pred_region
          _
        $region16: #{tpu_custom_call.1} parent=11 // pred_fallthru
          _
      $region12: #{tpu_custom_call.1} parent=5 // pred_fallthru
        _
      %p129 = scmp.lt.s32.totalorder %s12, 2
      // Predicated region
      $region17: #{tpu_custom_call.1} parent=5 // pred_check
        %p130 = pneg %p129
      $region18: #{tpu_custom_call.1} parent=5 // pred_check_branch
        %132 = sbr.rel (%p130) target = $region20
      $region19: #{tpu_custom_call.1} parent=5 // pred_region
        // Predicated region
        $region21: #{tpu_custom_call.1} parent=19 // pred_check
          %p133 = pneg %p32
        $region22: #{tpu_custom_call.1} parent=19 // pred_check_branch
          %135 = sbr.rel (%p133) target = $region24
        $region23: #{tpu_custom_call.1} parent=19 // pred_region
          %p136 = scmp.lt.s32.totalorder %s12, 1
          %s137 = scalar_select %p136, %s12, 1
          %s138 = smul.addr %s137, 8
          %s139 = scalar_lea.vmem %s0, %s138
        $region24: #{tpu_custom_call.1} parent=19 // pred_fallthru
          _
        // Predicated region
        $region25: #{tpu_custom_call.1} parent=19 // pred_check
          %p140 = pneg %p58
        $region26: #{tpu_custom_call.1} parent=19 // pred_check_branch
          %142 = sbr.rel (%p140) target = $region28
        $region27: #{tpu_custom_call.1} parent=19 // pred_region
          %p143 = scmp.lt.s32.totalorder %s12, 1
          %s144 = scalar_select %p143, %s12, 1
          %s145 = smul.addr %s144, 8
          %s146 = scalar_lea.vmem %s1, %s145
        $region28: #{tpu_custom_call.1} parent=19 // pred_fallthru
          _
      $region20: #{tpu_custom_call.1} parent=5 // pred_fallthru
        _
      %p147 = scmp.le.s32.totalorder 1, %s12
      %p148 = scmp.lt.s32.totalorder %s12, 3
      %p149 = pnand %p147, %p148
      %p150 = pneg %p149
      // Predicated region
      $region29: #{tpu_custom_call.1} parent=5 // pred_check
        _
      $region30: #{tpu_custom_call.1} parent=5 // pred_check_branch
        %152 = sbr.rel (%p149) target = $region32
      $region31: #{tpu_custom_call.1} parent=5 // pred_region
        %s153 = ssub.s32 %s12, 1
        %p154 = scmp.lt.s32.totalorder %s17, 1
        %s155 = scalar_select %p154, %s17, 1
        %s156 = smul.addr %s155, 8
        %s157 = scalar_lea.vmem %s0, %s156
        %p158 = pneg %p38
        %p159 = pneg %p35
        %p160 = scmp.lt.s32.totalorder %s17, 1
        %s161 = scalar_select %p160, %s17, 1
        %s162 = smul.addr %s161, 8
        %s163 = scalar_lea.vmem %s1, %s162
        %p164 = pneg %p64
        %p165 = pneg %p61
        %p166 = pneg %p85
        %p167 = pneg %p82
        %p168 = pneg %p111
        %p169 = pneg %p108
        %s170 = sand.u32 %s98, 1
        %s171 = scalar_lea.sflag [#allocation3], %s170
        %s172 = sand.u32 %s98, 1
        %s173 = smul.addr %s172, 8
        %s174 = scalar_lea.vmem [#allocation2], %s173
        %p175 = scmp.lt.s32.totalorder %s17, 1
        %s176 = scalar_select %p175, %s17, 1
        %s177 = smul.addr %s176, 8
        %s178 = scalar_lea.vmem %s0, %s177
        %p179 = scmp.lt.s32.totalorder %s17, 1
        %s180 = scalar_select %p179, %s17, 1
        %s181 = smul.addr %s180, 8
        %s182 = scalar_lea.vmem %s1, %s181
        %v183 = vld [vmem:[%s178] sm:$0xff]
        %v184 = vld [vmem:[%s182] sm:$0xff]
        %v185 = vlaneseq
        %v186 = vand.u32 %v185, 127
        %187 = vset.pattern.permute.xlu0 0
        %188 = vperm.xlu0 %187, %v184
        %v189 = vpop.permute.xlu0 %188
        %vm190 = vcmp.eq.s32.totalorder %v186, %v189
        %v191 = vsel %vm190, 1, 0
        %v192 = vcvt.s32.f32 %v191
        %v193 = vxor.u32 %v183, 2147483648
        %v194 = vmul.f32 %v193, 1.442695
        %v195 = vpow.pop %v194
        %v196 = vadd.f32 %v195, 1.0
        %v197 = vrcp.pop %v196
        %v198 = vmul.f32 1.0, %v197
        %vm199 = vcmp.ge.f32.partialorder %v183, 0.0
        %v200 = vsub.f32 1.0, %v198
        %v201 = vsel %vm199, %v198, %v200
        %v202 = vlog2.pop %v201
        %v203 = vmul.f32 %v202, 0.6931472
        %v204 = vmax.f32 %v183, 0.0
        %v205 = vmul.f32 %v183, %v192
        %v206 = vsub.f32 %v204, %v205
        %v207 = vsub.f32 %v206, %v203
        %v208 = vadd.f32 %v198, %v192
        %v209 = vmul.f32 %v198, %v192
        %v210 = vmul.f32 %v209, 2.0
        %v211 = vsub.f32 %v208, %v210
        %v212 = vmul.f32 %v192, -0.5
        %v213 = vadd.f32 %v212, 0.75
        %v214 = vmul.f32 %v213, %v207
        %v215 = vmul.f32 %v211, %v211
        %v216 = vmul.f32 %v214, %v215
        %vm217 = vcmask 31744
        %v218 = vsel %vm217, %v216, 0.0
        %219 = vadd.xlane.f32.xlu0 %v218
        %v220 = vpop.xlane.xlu0 %219
        %v221 = vrot.slane %v220, 4
        %v222 = vadd.f32 %v220, %v221
        %v223 = vrot.slane %v222, 2
        %v224 = vadd.f32 %v222, %v223
        %v225 = vrot.slane %v224, 1
        %v226 = vadd.f32 %v224, %v225
        %s227 = vtos %v226
        %vm228 = vcmp.lt.s32.totalorder %v186, 3
        %v229 = vsel %vm228, %v183, -inf
        %v230 = vsel %vm217, %v229, -inf
        %231 = vmax.xlane.f32.xlu0 %v230
        %v232 = vpop.xlane.xlu0 %231
        %vm233 = vcmp.eq.s32.totalorder %v186, 3
        %v234 = vsel %vm233, %v183, 0.0
        %v235 = vsel %vm217, %v234, 0.0
        %236 = vadd.xlane.f32.xlu0 %v235
        %v237 = vpop.xlane.xlu0 %236
        %vm238 = vcmp.ge.f32.partialorder %v232, %v237
        %v239 = vsel %vm238, 1, 0
        %v240 = vcvt.s32.f32 %v239
        %vm241 = vcmask 7168
        %v242 = vsel %vm241, %v240, 0.0
        %243 = vadd.xlane.f32.xlu0 %v242
        %v244 = vpop.xlane.xlu0 %243
        %v245 = vrot.slane %v244, 4
        %v246 = vadd.f32 %v244, %v245
        %v247 = vrot.slane %v246, 2
        %v248 = vadd.f32 %v246, %v247
        %v249 = vrot.slane %v248, 1
        %v250 = vadd.f32 %v248, %v249
        %s251 = vtos %v250
        %vm252 = vcmp.eq.s32.totalorder %v186, 0
        %vm253 = vcmp.eq.s32.totalorder %v186, 1
        %v254 = vstv %s251
        %v255 = vsel %vm253, %v254, 0.0
        %v256 = vstv %s227
        %v257 = vsel %vm252, %v256, %v255
        %258 = vst [vmem:[%s174] sm:$0xff] %v257
        %p259 = scmp.eq.s32.totalorder %s17, 0
        // Predicated region
        $region33: #{tpu_custom_call.1} parent=31 // pred_check
          %p260 = pneg %p259
        $region34: #{tpu_custom_call.1} parent=31 // pred_check_branch
          %262 = sbr.rel (%p260) target = $region36
        $region35: #{tpu_custom_call.1} parent=31 // pred_region
          %v263 = vld [vmem:[%s2] sm:$0xff]
          %v265 = vrot.slane %v263, 4
          %v267 = vsub.f32 %v263, %v265
          %v268 = vand.u32 2147483647, %v267
          %vm269 = vcmask 44032
          %v270 = vsel %vm269, %v268, 0.0
          %271 = vadd.xlane.f32.xlu0 %v270
          %v272 = vpop.xlane.xlu0 %271
          %v273 = vrot.slane %v272, 4
          %v274 = vadd.f32 %v272, %v273
          %v275 = vrot.slane %v274, 2
          %v276 = vadd.f32 %v274, %v275
          %v277 = vrot.slane %v276, 1
          %v278 = vadd.f32 %v276, %v277
          %s279 = vtos %v278
          %v280 = vmul.f32 %v263, 0.5
          %v282 = vrot.slane %v280, 2
          %v284 = vsub.f32 %v263, %v282
          %v285 = vadd.f32 %v263, %v282
          %v286 = vsub.f32 %v285, %v284
          %v288 = vrot.slane %v286, 1
          %v290 = vmul.f32 %v286, %v288
          %v292 = vrot.slane %v285, 4
          %v294 = vmin.f32 %v285, %v292
          %v296 = vrot.slane %v284, 4
          %v298 = vmax.f32 %v284, %v296
          %v299 = vsub.f32 %v294, %v298
          %v300 = vmax.f32 %v299, 0.0
          %v302 = vrot.slane %v300, 1
          %v304 = vmul.f32 %v300, %v302
          %v306 = vrot.slane %v290, 4
          %v308 = vadd.f32 %v290, %v306
          %v309 = vsub.f32 %v308, %v304
          %v310 = vmax.f32 %v309, 1e-08
          %v311 = vrcp.pop %v310
          %v312 = vmul.f32 %v304, %v311
          %v313 = vmax.f32 %v285, %v292
          %v314 = vmin.f32 %v284, %v296
          %v315 = vsub.f32 %v313, %v314
          %v317 = vrot.slane %v315, 1
          %v319 = vmul.f32 %v315, %v317
          %v320 = vmax.f32 %v319, 1e-08
          %v321 = vsub.f32 %v320, %v310
          %v322 = vrcp.pop %v320
          %v323 = vmul.f32 %v321, %v322
          %v324 = vsub.f32 %v312, %v323
          %v325 = vsub.f32 1.0, %v324
          %vm326 = vcmask 40960
          %v327 = vsel %vm326, %v325, 0.0
          %328 = vadd.xlane.f32.xlu0 %v327
          %v329 = vpop.xlane.xlu0 %328
          %v330 = vrot.slane %v329, 4
          %v331 = vadd.f32 %v329, %v330
          %v332 = vrot.slane %v331, 2
          %v333 = vadd.f32 %v331, %v332
          %v334 = vrot.slane %v333, 1
          %v335 = vadd.f32 %v333, %v334
          %s336 = vtos %v335
          %vm337 = vcmp.eq.s32.totalorder %v186, 2
          %v338 = vstv %s336
          %v339 = vsel %vm233, %v338, 0.0
          %v340 = vstv %s279
          %v341 = vsel %vm337, %v340, %v339
          %v342 = vld [vmem:[%s174] sm:$0xff]
          %v343 = vadd.f32 %v342, %v341
          %344 = vst [vmem:[%s174] sm:$0xff] %v343
        $region36: #{tpu_custom_call.1} parent=31 // pred_fallthru
          _
        %s345 = sand.u32 %s98, 1
        %s346 = scalar_lea.sflag [#allocation3], %s345
        %s347 = sand.u32 %s98, 1
        %s348 = smul.addr %s347, 8
        %s349 = scalar_lea.vmem [#allocation2], %s348
        // Predicated region
        $region37: #{tpu_custom_call.1} parent=31 // pred_check
          %p350 = pneg %p108
        $region38: #{tpu_custom_call.1} parent=31 // pred_check_branch
          %352 = sbr.rel (%p350) target = $region40
        $region39: #{tpu_custom_call.1} parent=31 // pred_region
          %s354 = ssub.s32 128, 128
          %355 = vsyncadd %s346, %s354
          %s356 = smul.addr %s17, 128
          %s357 = scalar_lea.hbm %s3, %s356
          %s359 = sshll.u32 %s349, 4
          %s360 = int_to_ptr.vmem [resolvable:$true] %s359
          %362 = dma.vmem_to_hbm [thread:$0]  %s360, 128, %s357, %s346
        $region40: #{tpu_custom_call.1} parent=31 // pred_fallthru
          _
      $region32: #{tpu_custom_call.1} parent=5 // pred_fallthru
        _
      %p363 = scmp.le.s32.totalorder 2, %s12
      // Predicated region
      $region41: #{tpu_custom_call.1} parent=5 // pred_check
        %p364 = pneg %p363
      $region42: #{tpu_custom_call.1} parent=5 // pred_check_branch
        %366 = sbr.rel (%p364) target = $region44
      $region43: #{tpu_custom_call.1} parent=5 // pred_region
        %s367 = ssub.s32 %s12, 2
        // Predicated region
        $region45: #{tpu_custom_call.1} parent=43 // pred_check
          %p368 = pneg %p114
        $region46: #{tpu_custom_call.1} parent=43 // pred_check_branch
          %370 = sbr.rel (%p368) target = $region48
        $region47: #{tpu_custom_call.1} parent=43 // pred_region
          %s371 = sand.u32 %s99, 1
          %s372 = scalar_lea.sflag [#allocation3], %s371
          %s373 = sand.u32 %s99, 1
          %s374 = smul.addr %s373, 8
          %s375 = scalar_lea.vmem [#allocation2], %s374
          %376 = dma.done %s372, 128
        $region48: #{tpu_custom_call.1} parent=43 // pred_fallthru
          _
      $region44: #{tpu_custom_call.1} parent=5 // pred_fallthru
        _
    $region6: #{tpu_custom_call.1} parent=1 // loop_footer
      %s16 = sadd.s32 1, %s12
    $region7: #{tpu_custom_call.1} parent=1 // loop_footer_branch
      %11 = sbr.rel target = $region3
    $region8: #{tpu_custom_call.1} parent=1 // loop_exit
      _
    %377 = vsyncpa [#allocation3], 1
    %s378 = scalar_lea.sflag [#allocation3], 1
    %379 = vsyncpa %s378, 1

</llo_original>
